<compile_context>
chip_gen: v7x
topology: tpu7x:2x2x1
jax: 0.10.0
libtpu: 0.0.40
codegen_flags: <defaults>
</compile_context>

<pallas_src>
import functools
import math

import jax
import jax.numpy as jnp
import numpy as np
from jax.experimental import pallas as pl
from jax.experimental.pallas import tpu as pltpu

EPS = 1e-5


def _residual_block_kernel(x_ref, w1_ref, b1_ref, w2_ref, b2_ref, o_ref, *, seg_len):
    """One grid step processes a (C, b_tile*seg_len) channel-major slab.

    x_ref : (C, BL) float32, BL = b_tile * seg_len (b_tile batch instances concatenated
            along lanes, each a contiguous segment of length seg_len).
    w*_ref: (C, 3C) compute dtype -- the 3 conv taps fused along the contraction dim.
    b*_ref: (C, 1) float32.
    o_ref : (C, BL) float32.
    """
    C, BL = x_ref.shape
    L = seg_len
    n_seg = BL // L
    cdt = w1_ref.dtype
    inv_len = 1.0 / L

    x = x_ref[...]                      # (C, BL) f32, kept for the residual add
    w1 = w1_ref[...]
    w2 = w2_ref[...]
    b1 = b1_ref[...]
    b2 = b2_ref[...]

    # Per-instance boundary masks (computed once per grid step). Instances are concatenated
    # along lanes, so a global +-1 lane shift leaks the neighbouring instance's edge value
    # into the first/last column of each segment -- exactly the columns Conv1d(padding=1)
    # pads with zeros.
    col = jax.lax.broadcasted_iota(jnp.int32, (C, BL), 1)
    pos = col % L
    left_edge = pos == 0                # tap k=0 reads x[l-1] -> zero at l=0
    right_edge = pos == (L - 1)         # tap k=2 reads x[l+1] -> zero at l=L-1

    def conv1d(inp, w_cat, bias):
        # inp: (C, BL) compute dtype. Shifted taps ONCE per conv per grid step via jnp.roll
        # (static shift; pltpu.roll would require non-negative shifts) + boundary masks.
        # No padded HBM copy, no per-batch-element concat or bias broadcast.
        x_m1 = jnp.where(left_edge, 0.0, jnp.roll(inp, 1, axis=1))    # x[l-1]
        x_p1 = jnp.where(right_edge, 0.0, jnp.roll(inp, -1, axis=1))  # x[l+1]
        x_cat = jnp.concatenate([x_m1, inp, x_p1], axis=0)            # (3C, BL)
        # Single MXU matmul for all 3 taps and the whole batch tile; f32 accumulation.
        y = jnp.dot(w_cat, x_cat, preferred_element_type=jnp.float32)  # (C, BL)
        return y + bias                                                # (C,1) broadcast, f32

    def instance_norm(y):
        # Per-(channel, instance) stats over each length-L lane segment. Two passes
        # (mean, then centered second moment) avoid E[y^2]-E[y]^2 cancellation and match
        # PyTorch InstanceNorm1d (biased variance, eps inside the sqrt, affine=False).
        y3 = y.reshape(C, n_seg, L)
        mean = jnp.sum(y3, axis=2, keepdims=True) * inv_len
        cen = y3 - mean
        var = jnp.sum(cen * cen, axis=2, keepdims=True) * inv_len
        return (cen * jax.lax.rsqrt(var + EPS)).reshape(C, BL)

    h = conv1d(x.astype(cdt), w1, b1)
    h = instance_norm(h)
    h = jnp.maximum(h, 0.0)                        # ReLU
    h = conv1d(h.astype(cdt), w2, b2)
    h = instance_norm(h)
    o_ref[...] = (x + h).astype(o_ref.dtype)       # residual add in f32


def _vmem_capacity_bytes():
    """Physical VMEM capacity (128 MiB v5e/v6e, 64 MiB v7x); conservative fallback."""
    try:
        info = pltpu.get_tpu_info()
        cap = getattr(info, "vmem_capacity_bytes", None)
        if cap:
            return int(cap)
    except Exception:
        pass
    return 128 * 1024 * 1024


def _pick_b_tile(N, C, L, vmem_cap):
    """Batch tile sized from the VMEM budget.

    Targets a multi-MiB f32 x block (HBM-bound regime) while leaving room for the peak live
    set (~10-12 (C, BL)-f32 slabs: x, the (3C, BL) x_cat, conv/norm temporaries, plus
    double-buffered x/out HBM blocks). Keeps >= 4 grid steps when N allows so the "parallel"
    axis can feed both v7x TensorCores and the pipeline stays busy.
    """
    bytes_per_col = 4 * max(C, 1)                          # one f32 column of the (C, N*L) slab
    hi_cols = max(L, (vmem_cap // 32) // bytes_per_col)    # ~4 MiB x block on 128 MiB chips
    lo_cols = max(L, (1 << 20) // bytes_per_col)           # ~1 MiB x block lower target
    b_hi = max(1, min(N, hi_cols // L))
    b_lo = max(1, min(N, lo_cols // L))
    b_tile = min(b_hi, max(b_lo, pl.cdiv(N, 4)))
    if b_tile < N:
        # Block's last dim (b_tile*L) must be a multiple of 128 (BlockSpec constraint and
        # unmasked lane-dense stores) unless the block spans the whole batch.
        step = 128 // math.gcd(L, 128)
        b_tile = max(step, (b_tile // step) * step)
        b_tile = min(b_tile, N)
    return b_tile


def residual_block(x, w1, b1, w2, b2, *, compute_dtype=jnp.bfloat16, b_tile=None):
    """x: (N, C, L) f32; w*: (C, C, 3) PyTorch Conv1d layout; b*: (C,). Returns (N, C, L)."""
    N, C, L = x.shape

    # Fuse the 3 taps into one contraction: W_cat[co, k*C + ci] = w[co, ci, k]  -> (C, 3C).
    def fuse(w):
        return jnp.transpose(w, (0, 2, 1)).reshape(C, 3 * C).astype(compute_dtype)

    w1c, w2c = fuse(w1), fuse(w2)
    b1c = b1.reshape(C, 1).astype(jnp.float32)
    b2c = b2.reshape(C, 1).astype(jnp.float32)

    # Channel-major, lane-dense layout: each instance is a contiguous length-L segment of the
    # lane axis, so the whole batch tile becomes the matmul free dim and the output store is a
    # full-lane vst. This transpose is wrapper-side layout plumbing, not in-kernel compute.
    xt = jnp.transpose(x, (1, 0, 2)).reshape(C, N * L)

    vmem_cap = _vmem_capacity_bytes()
    if b_tile is None:
        b_tile = _pick_b_tile(N, C, L, vmem_cap)
    b_tile = max(1, min(b_tile, N))
    BL = b_tile * L
    grid = (pl.cdiv(N, b_tile),)

    kernel = functools.partial(_residual_block_kernel, seg_len=L)
    out = pl.pallas_call(
        kernel,
        out_shape=jax.ShapeDtypeStruct((C, N * L), x.dtype),
        grid_spec=pltpu.PrefetchScalarGridSpec(
            num_scalar_prefetch=0,
            grid=grid,
            in_specs=[
                pl.BlockSpec((C, BL), lambda n: (0, n)),       # x batch tile (lane-dense)
                pl.BlockSpec((C, 3 * C), lambda n: (0, 0)),    # W1_cat (resident)
                pl.BlockSpec((C, 1), lambda n: (0, 0)),        # b1
                pl.BlockSpec((C, 3 * C), lambda n: (0, 0)),    # W2_cat (resident)
                pl.BlockSpec((C, 1), lambda n: (0, 0)),        # b2
            ],
            out_specs=pl.BlockSpec((C, BL), lambda n: (0, n)),
        ),
        compiler_params=pltpu.CompilerParams(
            dimension_semantics=("parallel",),
            vmem_limit_bytes=int(min(max(32 * 1024 * 1024, vmem_cap * 3 // 4),
                                     128 * 1024 * 1024)),
        ),
    )(xt, w1c, b1c, w2c, b2c)

    return out.reshape(C, N, L).transpose(1, 0, 2)


def _reference(x, w1, b1, w2, b2):
    """Pure-JAX reference matching PyTorch Conv1d/InstanceNorm1d semantics."""
    def conv1d(inp, w, b):
        out = jax.lax.conv_general_dilated(
            inp, w, window_strides=(1,), padding=((1, 1),),
            dimension_numbers=("NCH", "OIH", "NCH"),
            precision=jax.lax.Precision.HIGHEST,
        )
        return out + b[None, :, None]

    def inorm(y):
        mean = jnp.mean(y, axis=-1, keepdims=True)
        var = jnp.mean((y - mean) ** 2, axis=-1, keepdims=True)
        return (y - mean) / jnp.sqrt(var + EPS)

    h = conv1d(x, w1, b1)
    h = inorm(h)
    h = jnp.maximum(h, 0.0)
    h = conv1d(h, w2, b2)
    h = inorm(h)
    return x + h


if __name__ == "__main__":
    key = jax.random.PRNGKey(0)
    N, C, L = 2, 4, 16  # batch, dim, sequence length

    k_x, k_w1, k_b1, k_w2, k_b2 = jax.random.split(key, 5)
    x = jax.random.normal(k_x, (N, C, L), dtype=jnp.float32)

    # Deterministic "PyTorch-like" init: uniform(-bound, bound), bound = 1/sqrt(C*3).
    bound = 1.0 / np.sqrt(C * 3)
    w1 = jax.random.uniform(k_w1, (C, C, 3), jnp.float32, -bound, bound)
    b1 = jax.random.uniform(k_b1, (C,), jnp.float32, -bound, bound)
    w2 = jax.random.uniform(k_w2, (C, C, 3), jnp.float32, -bound, bound)
    b2 = jax.random.uniform(k_b2, (C,), jnp.float32, -bound, bound)

    ref = jax.block_until_ready(_reference(x, w1, b1, w2, b2))

    # Full-f32 matmul path: validates the PyTorch semantics (tolerance covers TPU matmul
    # pass-decomposition differences).
    out_f32 = jax.block_until_ready(
        residual_block(x, w1, b1, w2, b2, compute_dtype=jnp.float32))
    np.testing.assert_allclose(np.asarray(out_f32), np.asarray(ref), rtol=1e-3, atol=1e-3)

    # Default bf16-MXU path (f32 accumulation / norm / residual): relaxed tolerance since the
    # activations are unit-variance after the norms and bf16 rounding is ~4e-3 per product.
    out_bf16 = jax.block_until_ready(residual_block(x, w1, b1, w2, b2))
    np.testing.assert_allclose(np.asarray(out_bf16), np.asarray(ref), rtol=1e-1, atol=1e-1)

    print("KERNEL_OK")
</pallas_src>

<mosaic_0001>
module attributes {stable_mosaic.version = 11 : i64} {
  func.func @_residual_block_kernel(%arg0: i32, %arg1: memref<4x32xf32, #tpu.memory_space<vmem>>, %arg2: memref<4x12xf32, #tpu.memory_space<vmem>>, %arg3: memref<4x1xf32, #tpu.memory_space<vmem>>, %arg4: memref<4x12xf32, #tpu.memory_space<vmem>>, %arg5: memref<4x1xf32, #tpu.memory_space<vmem>>, %arg6: memref<4x32xf32, #tpu.memory_space<vmem>>) attributes {dimension_semantics = [#tpu.dimension_semantics<parallel>], iteration_bounds = array<i64: 1>, scalar_prefetch = 0 : i64, scratch_operands = 0 : i64, tpu.core_type = #tpu.core_type<tc>, window_params = [{transform_indices = @transform_0, window_bounds = array<i64: 4, 32>}, {pipeline_mode = #tpu.pipeline_mode<synchronous>, transform_indices = @transform_1, window_bounds = array<i64: 4, 12>}, {pipeline_mode = #tpu.pipeline_mode<synchronous>, transform_indices = @transform_2, window_bounds = array<i64: 4, 1>}, {pipeline_mode = #tpu.pipeline_mode<synchronous>, transform_indices = @transform_3, window_bounds = array<i64: 4, 12>}, {pipeline_mode = #tpu.pipeline_mode<synchronous>, transform_indices = @transform_4, window_bounds = array<i64: 4, 1>}, {transform_indices = @transform_5, window_bounds = array<i64: 4, 32>}]} {
    %c0 = arith.constant 0 : index
    %c0_0 = arith.constant 0 : index
    %0 = vector.load %arg1[%c0, %c0_0] : memref<4x32xf32, #tpu.memory_space<vmem>>, vector<4x32xf32>
    %c0_1 = arith.constant 0 : index
    %c0_2 = arith.constant 0 : index
    %1 = vector.load %arg2[%c0_1, %c0_2] : memref<4x12xf32, #tpu.memory_space<vmem>>, vector<4x12xf32>
    %c0_3 = arith.constant 0 : index
    %c0_4 = arith.constant 0 : index
    %2 = vector.load %arg4[%c0_3, %c0_4] : memref<4x12xf32, #tpu.memory_space<vmem>>, vector<4x12xf32>
    %c0_5 = arith.constant 0 : index
    %c0_6 = arith.constant 0 : index
    %3 = vector.load %arg3[%c0_5, %c0_6] : memref<4x1xf32, #tpu.memory_space<vmem>>, vector<4x1xf32>
    %c0_7 = arith.constant 0 : index
    %c0_8 = arith.constant 0 : index
    %4 = vector.load %arg5[%c0_7, %c0_8] : memref<4x1xf32, #tpu.memory_space<vmem>>, vector<4x1xf32>
    %5 = tpu.iota {dimensions = array<i32: 1>} : vector<4x32xi32>
    %c16_i32 = arith.constant 16 : i32
    %c0_i32 = arith.constant 0 : i32
    %6 = arith.cmpi eq, %c16_i32, %c0_i32 : i32
    %c1_i32 = arith.constant 1 : i32
    %7 = arith.select %6, %c1_i32, %c16_i32 : i32
    %8 = vector.broadcast %7 : i32 to vector<4x32xi32>
    %9 = arith.remsi %5, %8 : vector<4x32xi32>
    %c0_i32_9 = arith.constant 0 : i32
    %10 = vector.broadcast %c0_i32_9 : i32 to vector<4x32xi32>
    %11 = arith.cmpi ne, %9, %10 : vector<4x32xi32>
    %c0_i32_10 = arith.constant 0 : i32
    %12 = vector.broadcast %c0_i32_10 : i32 to vector<4x32xi32>
    %13 = arith.cmpi slt, %9, %12 : vector<4x32xi32>
    %c0_i32_11 = arith.constant 0 : i32
    %14 = arith.cmpi slt, %7, %c0_i32_11 : i32
    %15 = vector.broadcast %14 : i1 to vector<4x32xi1>
    %16 = vector.broadcast %15 : vector<4x32xi1> to vector<4x32xi1>
    %17 = arith.xori %13, %16 : vector<4x32xi1>
    %18 = arith.andi %17, %11 : vector<4x32xi1>
    %19 = vector.broadcast %7 : i32 to vector<4x32xi32>
    %20 = arith.addi %9, %19 : vector<4x32xi32>
    %21 = arith.select %18, %20, %9 : vector<4x32xi1>, vector<4x32xi32>
    %c0_i32_12 = arith.constant 0 : i32
    %22 = vector.broadcast %c0_i32_12 : i32 to vector<4x32xi32>
    %23 = arith.cmpi eq, %21, %22 : vector<4x32xi32>
    %c15_i32 = arith.constant 15 : i32
    %24 = vector.broadcast %c15_i32 : i32 to vector<4x32xi32>
    %25 = arith.cmpi eq, %21, %24 : vector<4x32xi32>
    %26 = vector.extract_strided_slice %0 {offsets = [0, 31], sizes = [4, 1], strides = [1, 1]} : vector<4x32xf32> to vector<4x1xf32>
    %27 = vector.extract_strided_slice %0 {offsets = [0, 0], sizes = [4, 31], strides = [1, 1]} : vector<4x32xf32> to vector<4x31xf32>
    %28 = tpu.concatenate %26, %27 in 1 : vector<4x1xf32>, vector<4x31xf32> -> vector<4x32xf32>
    %cst = arith.constant 0.000000e+00 : f32
    %29 = vector.broadcast %cst : f32 to vector<4x32xf32>
    %30 = arith.select %23, %29, %28 : vector<4x32xi1>, vector<4x32xf32>
    %31 = vector.extract_strided_slice %0 {offsets = [0, 1], sizes = [4, 31], strides = [1, 1]} : vector<4x32xf32> to vector<4x31xf32>
    %32 = vector.extract_strided_slice %0 {offsets = [0, 0], sizes = [4, 1], strides = [1, 1]} : vector<4x32xf32> to vector<4x1xf32>
    %33 = tpu.concatenate %31, %32 in 1 : vector<4x31xf32>, vector<4x1xf32> -> vector<4x32xf32>
    %cst_13 = arith.constant 0.000000e+00 : f32
    %34 = vector.broadcast %cst_13 : f32 to vector<4x32xf32>
    %35 = arith.select %25, %34, %33 : vector<4x32xi1>, vector<4x32xf32>
    %36 = tpu.concatenate %30, %0, %35 in 0 : vector<4x32xf32>, vector<4x32xf32>, vector<4x32xf32> -> vector<12x32xf32>
    %cst_14 = arith.constant dense<0.000000e+00> : vector<4x32xf32>
    %37 = tpu.matmul %1, %36, %cst_14 {dimension_numbers = #tpu.dot_dimension_numbers<[1], [0], [0], [1], [0, 0, 1, 1], [], []>} : vector<4x12xf32>, vector<12x32xf32>, vector<4x32xf32> -> vector<4x32xf32>
    %38 = vector.broadcast %3 : vector<4x1xf32> to vector<4x32xf32>
    %39 = arith.addf %37, %38 : vector<4x32xf32>
    %40 = vector.shape_cast %39 : vector<4x32xf32> to vector<4x2x16xf32>
    %cst_15 = arith.constant dense<0.000000e+00> : vector<4x2xf32>
    %41 = vector.multi_reduction <add>, %40, %cst_15 [2] : vector<4x2x16xf32> to vector<4x2xf32>
    %42 = vector.shape_cast %41 : vector<4x2xf32> to vector<4x2x1xf32>
    %cst_16 = arith.constant 6.250000e-02 : f32
    %43 = vector.broadcast %cst_16 : f32 to vector<4x2x1xf32>
    %44 = arith.mulf %42, %43 : vector<4x2x1xf32>
    %45 = vector.broadcast %44 : vector<4x2x1xf32> to vector<4x2x16xf32>
    %46 = arith.subf %40, %45 : vector<4x2x16xf32>
    %47 = arith.mulf %46, %46 : vector<4x2x16xf32>
    %cst_17 = arith.constant dense<0.000000e+00> : vector<4x2xf32>
    %48 = vector.multi_reduction <add>, %47, %cst_17 [2] : vector<4x2x16xf32> to vector<4x2xf32>
    %49 = vector.shape_cast %48 : vector<4x2xf32> to vector<4x2x1xf32>
    %cst_18 = arith.constant 6.250000e-02 : f32
    %50 = vector.broadcast %cst_18 : f32 to vector<4x2x1xf32>
    %51 = arith.mulf %49, %50 : vector<4x2x1xf32>
    %cst_19 = arith.constant 9.99999974E-6 : f32
    %52 = vector.broadcast %cst_19 : f32 to vector<4x2x1xf32>
    %53 = arith.addf %51, %52 : vector<4x2x1xf32>
    %54 = math.rsqrt %53 : vector<4x2x1xf32>
    %55 = vector.broadcast %54 : vector<4x2x1xf32> to vector<4x2x16xf32>
    %56 = arith.mulf %46, %55 : vector<4x2x16xf32>
    %57 = vector.shape_cast %56 : vector<4x2x16xf32> to vector<4x32xf32>
    %cst_20 = arith.constant 0.000000e+00 : f32
    %58 = vector.broadcast %cst_20 : f32 to vector<4x32xf32>
    %59 = arith.maximumf %57, %58 : vector<4x32xf32>
    %60 = vector.extract_strided_slice %59 {offsets = [0, 31], sizes = [4, 1], strides = [1, 1]} : vector<4x32xf32> to vector<4x1xf32>
    %61 = vector.extract_strided_slice %59 {offsets = [0, 0], sizes = [4, 31], strides = [1, 1]} : vector<4x32xf32> to vector<4x31xf32>
    %62 = tpu.concatenate %60, %61 in 1 : vector<4x1xf32>, vector<4x31xf32> -> vector<4x32xf32>
    %cst_21 = arith.constant 0.000000e+00 : f32
    %63 = vector.broadcast %cst_21 : f32 to vector<4x32xf32>
    %64 = arith.select %23, %63, %62 : vector<4x32xi1>, vector<4x32xf32>
    %65 = vector.extract_strided_slice %59 {offsets = [0, 1], sizes = [4, 31], strides = [1, 1]} : vector<4x32xf32> to vector<4x31xf32>
    %66 = vector.extract_strided_slice %59 {offsets = [0, 0], sizes = [4, 1], strides = [1, 1]} : vector<4x32xf32> to vector<4x1xf32>
    %67 = tpu.concatenate %65, %66 in 1 : vector<4x31xf32>, vector<4x1xf32> -> vector<4x32xf32>
    %cst_22 = arith.constant 0.000000e+00 : f32
    %68 = vector.broadcast %cst_22 : f32 to vector<4x32xf32>
    %69 = arith.select %25, %68, %67 : vector<4x32xi1>, vector<4x32xf32>
    %70 = tpu.concatenate %64, %59, %69 in 0 : vector<4x32xf32>, vector<4x32xf32>, vector<4x32xf32> -> vector<12x32xf32>
    %cst_23 = arith.constant dense<0.000000e+00> : vector<4x32xf32>
    %71 = tpu.matmul %2, %70, %cst_23 {dimension_numbers = #tpu.dot_dimension_numbers<[1], [0], [0], [1], [0, 0, 1, 1], [], []>} : vector<4x12xf32>, vector<12x32xf32>, vector<4x32xf32> -> vector<4x32xf32>
    %72 = vector.broadcast %4 : vector<4x1xf32> to vector<4x32xf32>
    %73 = arith.addf %71, %72 : vector<4x32xf32>
    %74 = vector.shape_cast %73 : vector<4x32xf32> to vector<4x2x16xf32>
    %cst_24 = arith.constant dense<0.000000e+00> : vector<4x2xf32>
    %75 = vector.multi_reduction <add>, %74, %cst_24 [2] : vector<4x2x16xf32> to vector<4x2xf32>
    %76 = vector.shape_cast %75 : vector<4x2xf32> to vector<4x2x1xf32>
    %cst_25 = arith.constant 6.250000e-02 : f32
    %77 = vector.broadcast %cst_25 : f32 to vector<4x2x1xf32>
    %78 = arith.mulf %76, %77 : vector<4x2x1xf32>
    %79 = vector.broadcast %78 : vector<4x2x1xf32> to vector<4x2x16xf32>
    %80 = arith.subf %74, %79 : vector<4x2x16xf32>
    %81 = arith.mulf %80, %80 : vector<4x2x16xf32>
    %cst_26 = arith.constant dense<0.000000e+00> : vector<4x2xf32>
    %82 = vector.multi_reduction <add>, %81, %cst_26 [2] : vector<4x2x16xf32> to vector<4x2xf32>
    %83 = vector.shape_cast %82 : vector<4x2xf32> to vector<4x2x1xf32>
    %cst_27 = arith.constant 6.250000e-02 : f32
    %84 = vector.broadcast %cst_27 : f32 to vector<4x2x1xf32>
    %85 = arith.mulf %83, %84 : vector<4x2x1xf32>
    %cst_28 = arith.constant 9.99999974E-6 : f32
    %86 = vector.broadcast %cst_28 : f32 to vector<4x2x1xf32>
    %87 = arith.addf %85, %86 : vector<4x2x1xf32>
    %88 = math.rsqrt %87 : vector<4x2x1xf32>
    %89 = vector.broadcast %88 : vector<4x2x1xf32> to vector<4x2x16xf32>
    %90 = arith.mulf %80, %89 : vector<4x2x16xf32>
    %91 = vector.shape_cast %90 : vector<4x2x16xf32> to vector<4x32xf32>
    %92 = arith.addf %0, %91 : vector<4x32xf32>
    %c0_29 = arith.constant 0 : index
    %c0_30 = arith.constant 0 : index
    %93 = vector.load %arg6[%c0_29, %c0_30] : memref<4x32xf32, #tpu.memory_space<vmem>>, vector<4x32xf32>
    tpu.vector_store %arg6[%c0_29, %c0_30], %92 {strides = array<i32>} : memref<4x32xf32, #tpu.memory_space<vmem>>, vector<4x32xf32>,
    return
  }
  func.func @transform_0(%arg0: i32) -> (i32, i32) {
    %c0_i32 = arith.constant 0 : i32
    %c0_i32_0 = arith.constant 0 : i32
    return %c0_i32, %arg0 : i32, i32
  }
  func.func @transform_1(%arg0: i32) -> (i32, i32) {
    %c0_i32 = arith.constant 0 : i32
    %c0_i32_0 = arith.constant 0 : i32
    %c0_i32_1 = arith.constant 0 : i32
    return %c0_i32, %c0_i32_0 : i32, i32
  }
  func.func @transform_2(%arg0: i32) -> (i32, i32) {
    %c0_i32 = arith.constant 0 : i32
    %c0_i32_0 = arith.constant 0 : i32
    %c0_i32_1 = arith.constant 0 : i32
    return %c0_i32, %c0_i32_0 : i32, i32
  }
  func.func @transform_3(%arg0: i32) -> (i32, i32) {
    %c0_i32 = arith.constant 0 : i32
    %c0_i32_0 = arith.constant 0 : i32
    %c0_i32_1 = arith.constant 0 : i32
    return %c0_i32, %c0_i32_0 : i32, i32
  }
  func.func @transform_4(%arg0: i32) -> (i32, i32) {
    %c0_i32 = arith.constant 0 : i32
    %c0_i32_0 = arith.constant 0 : i32
    %c0_i32_1 = arith.constant 0 : i32
    return %c0_i32, %c0_i32_0 : i32, i32
  }
  func.func @transform_5(%arg0: i32) -> (i32, i32) {
    %c0_i32 = arith.constant 0 : i32
    %c0_i32_0 = arith.constant 0 : i32
    return %c0_i32, %arg0 : i32, i32
  }
}

</mosaic_0001>

<llo_original>
// kernel: tpu_custom_call.1
$region0: #{tpu_custom_call.1}
  #allocation0 [shape = 'u32[]', space=smem, size = 0x4, offset = 0x4, fixed_abs, tag = 'smem constant byte address 0x4 - core index']
  #allocation1 [shape = 'u32[144,128]{1,0:T(1,128)}', space=vmem, size = 0x12000, scoped, tag = 'internal scratch']
  %s0 = inlined_call_operand.hbm [shape: f32[4,32], index: 0, kind: input, shape index: {}]
  %s1 = inlined_call_operand.hbm [shape: f32[4,12], index: 1, kind: input, shape index: {}]
  %s2 = inlined_call_operand.hbm [shape: f32[4,1], index: 2, kind: input, shape index: {}]
  %s3 = inlined_call_operand.hbm [shape: f32[4,12], index: 3, kind: input, shape index: {}]
  %s4 = inlined_call_operand.hbm [shape: f32[4,1], index: 4, kind: input, shape index: {}]
  %s5 = inlined_call_operand.hbm [shape: f32[4,32], index: 5, kind: output, shape index: {}]
  %s6 = sld [smem:[#allocation0]]
  $region50: #{tpu_custom_call.1} parent=0
    _
  %s8 = ssub.s32 1, %s6
  %s9 = scalar_select 0, %s8, %s6
  $region1: #{tpu_custom_call.1} parent=0
    #allocation2 [shape = 'u8[2048]{0}', space=vmem, size = 0x800, scoped, tag = 'input window, operand 0, single buffered']
    #allocation3 [shape = 's32[1]{0}', space=sflag, size = 0x4, scoped, tag = 'scoped memory for tpu_custom_call.1']
    #allocation4 [shape = 's32[1]{0}', space=sflag, size = 0x4, scoped, tag = 'scoped memory for tpu_custom_call.1']
    #allocation5 [shape = 'u8[2048]{0}', space=vmem, size = 0x800, scoped, tag = 'input window, operand 1, single buffered']
    #allocation6 [shape = 's32[1]{0}', space=sflag, size = 0x4, scoped, tag = 'scoped memory for tpu_custom_call.1']
    #allocation7 [shape = 'u8[2048]{0}', space=vmem, size = 0x800, scoped, tag = 'input window, operand 2, single buffered']
    #allocation8 [shape = 'u8[2048]{0}', space=vmem, size = 0x800, scoped, tag = 'input window, operand 3, single buffered']
    #allocation9 [shape = 's32[1]{0}', space=sflag, size = 0x4, scoped, tag = 'scoped memory for tpu_custom_call.1']
    #allocation10 [shape = 'u8[2048]{0}', space=vmem, size = 0x800, scoped, tag = 'input window, operand 4, single buffered']
    #allocation11 [shape = 'u8[2048]{0}', space=vmem, size = 0x800, scoped, tag = 'output window, operand 0, single buffered']
    %10 = vsyncpa [#allocation3], 0
    %11 = vsyncpa [#allocation6], 0
    %12 = vsyncpa [#allocation9], 0
    %13 = vsyncpa [#allocation4], 0
    // Predicated region
    $region2: #{tpu_custom_call.1} parent=1 // pred_check
      _
    $region3: #{tpu_custom_call.1} parent=1 // pred_check_branch
      %15 = sbr.rel (0) target = $region5
    $region4: #{tpu_custom_call.1} parent=1 // pred_region
      %s17 = ssub.s32 64, 64
      %18 = vsyncadd [#allocation3], %s17
      %s20 = sshll.u32 [#allocation2], 4
      %s21 = int_to_ptr.vmem [resolvable:$true] %s20
      %23 = dma.hbm_to_vmem [thread:$0]  %s0, 64, %s21, [#allocation3]
    $region5: #{tpu_custom_call.1} parent=1 // pred_fallthru
      _
    // Predicated region
    $region6: #{tpu_custom_call.1} parent=1 // pred_check
      _
    $region7: #{tpu_custom_call.1} parent=1 // pred_check_branch
      %25 = sbr.rel (0) target = $region9
    $region8: #{tpu_custom_call.1} parent=1 // pred_region
      %s27 = ssub.s32 64, 64
      %28 = vsyncadd [#allocation6], %s27
      %s30 = sshll.u32 [#allocation5], 4
      %s31 = int_to_ptr.vmem [resolvable:$true] %s30
      %33 = dma.hbm_to_vmem [thread:$0]  %s1, 64, %s31, [#allocation6]
    $region9: #{tpu_custom_call.1} parent=1 // pred_fallthru
      _
    // Predicated region
    $region10: #{tpu_custom_call.1} parent=1 // pred_check
      _
    $region11: #{tpu_custom_call.1} parent=1 // pred_check_branch
      %35 = sbr.rel (0) target = $region13
    $region12: #{tpu_custom_call.1} parent=1 // pred_region
      %s37 = ssub.s32 64, 64
      %38 = vsyncadd [#allocation6], %s37
      %s40 = sshll.u32 [#allocation7], 4
      %s41 = int_to_ptr.vmem [resolvable:$true] %s40
      %43 = dma.hbm_to_vmem [thread:$0]  %s2, 64, %s41, [#allocation6]
    $region13: #{tpu_custom_call.1} parent=1 // pred_fallthru
      _
    // Predicated region
    $region14: #{tpu_custom_call.1} parent=1 // pred_check
      _
    $region15: #{tpu_custom_call.1} parent=1 // pred_check_branch
      %45 = sbr.rel (0) target = $region17
    $region16: #{tpu_custom_call.1} parent=1 // pred_region
      %s47 = ssub.s32 64, 64
      %48 = vsyncadd [#allocation9], %s47
      %s50 = sshll.u32 [#allocation8], 4
      %s51 = int_to_ptr.vmem [resolvable:$true] %s50
      %53 = dma.hbm_to_vmem [thread:$0]  %s3, 64, %s51, [#allocation9]
    $region17: #{tpu_custom_call.1} parent=1 // pred_fallthru
      _
    // Predicated region
    $region18: #{tpu_custom_call.1} parent=1 // pred_check
      _
    $region19: #{tpu_custom_call.1} parent=1 // pred_check_branch
      %55 = sbr.rel (0) target = $region21
    $region20: #{tpu_custom_call.1} parent=1 // pred_region
      %s57 = ssub.s32 64, 64
      %58 = vsyncadd [#allocation9], %s57
      %s60 = sshll.u32 [#allocation10], 4
      %s61 = int_to_ptr.vmem [resolvable:$true] %s60
      %63 = dma.hbm_to_vmem [thread:$0]  %s4, 64, %s61, [#allocation9]
    $region21: #{tpu_custom_call.1} parent=1 // pred_fallthru
      _
    // Predicated region
    $region22: #{tpu_custom_call.1} parent=1 // pred_check
      _
    $region23: #{tpu_custom_call.1} parent=1 // pred_check_branch
      %65 = sbr.rel (0) target = $region25
    $region24: #{tpu_custom_call.1} parent=1 // pred_region
      %66 = dma.done [#allocation3], 64
    $region25: #{tpu_custom_call.1} parent=1 // pred_fallthru
      _
    // Predicated region
    $region26: #{tpu_custom_call.1} parent=1 // pred_check
      _
    $region27: #{tpu_custom_call.1} parent=1 // pred_check_branch
      %68 = sbr.rel (0) target = $region29
    $region28: #{tpu_custom_call.1} parent=1 // pred_region
      %69 = dma.done [#allocation6], 64
    $region29: #{tpu_custom_call.1} parent=1 // pred_fallthru
      _
    // Predicated region
    $region30: #{tpu_custom_call.1} parent=1 // pred_check
      _
    $region31: #{tpu_custom_call.1} parent=1 // pred_check_branch
      %71 = sbr.rel (0) target = $region33
    $region32: #{tpu_custom_call.1} parent=1 // pred_region
      %72 = dma.done [#allocation6], 64
    $region33: #{tpu_custom_call.1} parent=1 // pred_fallthru
      _
    // Predicated region
    $region34: #{tpu_custom_call.1} parent=1 // pred_check
      _
    $region35: #{tpu_custom_call.1} parent=1 // pred_check_branch
      %74 = sbr.rel (0) target = $region37
    $region36: #{tpu_custom_call.1} parent=1 // pred_region
      %75 = dma.done [#allocation9], 64
    $region37: #{tpu_custom_call.1} parent=1 // pred_fallthru
      _
    // Predicated region
    $region38: #{tpu_custom_call.1} parent=1 // pred_check
      _
    $region39: #{tpu_custom_call.1} parent=1 // pred_check_branch
      %77 = sbr.rel (0) target = $region41
    $region40: #{tpu_custom_call.1} parent=1 // pred_region
      %78 = dma.done [#allocation9], 64
    $region41: #{tpu_custom_call.1} parent=1 // pred_fallthru
      _
    %v79 = vld [vmem:[#allocation2] sm:$0xf]
    %v80 = vld [vmem:[#allocation5] sm:$0xf]
    %v81 = vld [vmem:[#allocation8] sm:$0xf]
    %v82 = vld [vmem:[#allocation7] sm:$0xf]
    %v83 = vld [vmem:[#allocation10] sm:$0xf]
    %v84 = vlaneseq
    %v85 = vand.u32 %v84, 127
    %vm86 = vcmp.lt.s32.totalorder %v85, 0
    %v87 = vsub.s32 0, %v85
    %v88 = vsel %vm86, %v87, %v85
    %v89 = vshrl.u32 %v88, 4
    %v90 = vand.u32 %v88, 15
    %v91 = vsub.s32 0, %v90
    %v92 = vsel %vm86, %v91, %v90
    %vm93 = vcmp.ne.s32.totalorder %v92, 0
    %vm94 = vcmp.lt.s32.totalorder %v92, 0
    %vm95 = vmand %vm94, %vm93
    %v96 = vadd.s32 %v92, 16
    %v97 = vsel %vm95, %v96, %v92
    %vm98 = vcmp.eq.s32.totalorder %v97, 0
    %vm99 = vcmp.eq.s32.totalorder %v97, 15
    %101 = vrot.lane.b32.xlu0 %v79, 97
    %v102 = vpop.permute.xlu0 %101
    %104 = vrot.lane.b32.xlu0 %v79, 1
    %v105 = vpop.permute.xlu0 %104
    %vm107 = vcmask 7168
    %v108 = vsel %vm107, %v102, %v105
    %v109 = vsel %vm98, 0.0, %v108
    %110 = vrot.lane.b32.xlu0 %v79, 127
    %v111 = vpop.permute.xlu0 %110
    %113 = vrot.lane.b32.xlu0 %v79, 31
    %v114 = vpop.permute.xlu0 %113
    %vm116 = vcmask 252928
    %v117 = vsel %vm116, %v111, %v114
    %v118 = vsel %vm99, 0.0, %v117
    %v119 = vrot.slane %v79, 4
    %vm121 = vcmask 1043456
    %v122 = vsel %vm121, %v109, %v119
    %124 = vset.pattern.permute.xlu0 0
    %125 = vperm.xlu0 %124, %v82
    %v126 = vpop.permute.xlu0 %125
    %vm128 = vcmask 97280
    %v130 = vsel %vm128, %v80, 0
    %v133 = vsel %vm121, %v118, 0
    %135 = vmatprep.subr.mxu0 0.0
    %136 = vmatpush1.msra.mxu0 %v122
    %137 = vmatprep.subr.mxu0 0.0
    %138 = vmatpush1.msra.mxu0 %v133
    %139 = vmatprep.subr.mxu0 0.0
    %140 = vmatpush1.msra.mxu0 0.0
    %141 = vmatprep.subr.mxu0 0.0
    %142 = vmatpush1.msra.mxu0 0.0
    %143 = vmatprep.subr.mxu0 0.0
    %144 = vmatpush1.msra.mxu0 0.0
    %145 = vmatprep.subr.mxu0 0.0
    %146 = vmatpush1.msra.mxu0 0.0
    %147 = vmatprep.subr.mxu0 0.0
    %148 = vmatpush1.msra.mxu0 0.0
    %149 = vmatprep.subr.mxu0 0.0
    %150 = vmatpush1.msra.mxu0 0.0
    %151 = vmatprep.subr.mxu0 0.0
    %152 = vmatpush1.msra.mxu0 0.0
    %153 = vmatprep.subr.mxu0 0.0
    %154 = vmatpush1.msra.mxu0 0.0
    %155 = vmatprep.subr.mxu0 0.0
    %156 = vmatpush1.msra.mxu0 0.0
    %157 = vmatprep.subr.mxu0 0.0
    %158 = vmatpush1.msra.mxu0 0.0
    %159 = vmatprep.subr.mxu0 0.0
    %160 = vmatpush1.msra.mxu0 0.0
    %161 = vmatprep.subr.mxu0 0.0
    %162 = vmatpush1.msra.mxu0 0.0
    %163 = vmatprep.subr.mxu0 0.0
    %164 = vmatpush1.msra.mxu0 0.0
    %165 = vmatprep.subr.mxu0 0.0
    %166 = vmatpush1.msra.mxu0 0.0
    %167 = vmatprep.subr.mxu0 0.0
    %168 = vmatpush1.msra.mxu0 0.0
    %169 = vmatprep.subr.mxu0 0.0
    %170 = vmatpush1.msra.mxu0 0.0
    %171 = vmatprep.subr.mxu0 0.0
    %172 = vmatpush1.msra.mxu0 0.0
    %173 = vmatprep.subr.mxu0 0.0
    %174 = vmatpush1.msra.mxu0 0.0
    %175 = vmatprep.subr.mxu0 0.0
    %176 = vmatpush1.msra.mxu0 0.0
    %177 = vmatprep.subr.mxu0 0.0
    %178 = vmatpush1.msra.mxu0 0.0
    %179 = vmatprep.subr.mxu0 0.0
    %180 = vmatpush1.msra.mxu0 0.0
    %181 = vmatprep.subr.mxu0 0.0
    %182 = vmatpush1.msra.mxu0 0.0
    %183 = vmatprep.subr.mxu0 0.0
    %184 = vmatpush1.msra.mxu0 0.0
    %185 = vmatprep.subr.mxu0 0.0
    %186 = vmatpush1.msra.mxu0 0.0
    %187 = vmatprep.subr.mxu0 0.0
    %188 = vmatpush1.msra.mxu0 0.0
    %189 = vmatprep.subr.mxu0 0.0
    %190 = vmatpush1.msra.mxu0 0.0
    %191 = vmatprep.subr.mxu0 0.0
    %192 = vmatpush1.msra.mxu0 0.0
    %193 = vmatprep.subr.mxu0 0.0
    %194 = vmatpush1.msra.mxu0 0.0
    %195 = vmatprep.subr.mxu0 0.0
    %196 = vmatpush1.msra.mxu0 0.0
    %197 = vmatprep.subr.mxu0 0.0
    %198 = vmatpush1.msra.mxu0 0.0
    %199 = vmatprep.mubr.f32.mxu0 0.0
    %200 = vmatmul.mubr.f32.gmra.mrb[0].mxu0 %v130
    %v201 = vpop.f32.mrb[0].mxu0
    %v202 = vadd.f32 %v126, %v201
    %v203 = vpop.f32.mrb[0].mxu0
    %204 = vdwg.mxu0
    %206 = vrot.lane.b32.xlu0 %v202, 112
    %v207 = vpop.permute.xlu0 %206
    %v209 = vunpack.c.l.s4 1983009808
    %v210 = vunpack.c.0.s8 %v209
    %v211 = vlaneseq
    %v212 = vshrl.u32 %v211, 7
    %v213 = vsub.s32 %v210, %v212
    %v214 = vrot.slane %v202, %v213
    %v217 = vunpack.c.l.s4 1983009808
    %v218 = vunpack.c.0.s8 %v217
    %v219 = vlaneseq
    %v220 = vshrl.u32 %v219, 7
    %v221 = vsub.s32 %v218, %v220
    %v222 = vrot.slane %v207, %v221
    %v223 = vcombine.low %v214, %v222
    %v224 = vcombine.high %v214, %v222
    %v226 = vunpack.c.l.s4 1934713408
    %v227 = vunpack.c.0.s8 %v226
    %v228 = vlaneseq
    %v229 = vshrl.u32 %v228, 7
    %v230 = vsub.s32 %v227, %v229
    %v231 = vrot.slane %v223, %v230
    %v233 = vunpack.c.l.s4 1934713408
    %v234 = vunpack.c.0.s8 %v233
    %v235 = vlaneseq
    %v236 = vshrl.u32 %v235, 7
    %v237 = vsub.s32 %v234, %v236
    %v238 = vrot.slane %v224, %v237
    %v239 = vcombine.high %v231, 0.0
    %v240 = vcombine.high %v238, 0.0
    %vm241 = vcmask 123904
    %v242 = vsel %vm241, %v231, 0.0
    %243 = vadd.xlane.f32.xlu0 %v242
    %v244 = vpop.xlane.xlu0 %243
    %v245 = vsel %vm241, %v239, 0.0
    %246 = vadd.xlane.f32.xlu0 %v245
    %v247 = vpop.xlane.xlu0 %246
    %v248 = vsel %vm241, %v238, 0.0
    %249 = vadd.xlane.f32.xlu0 %v248
    %v250 = vpop.xlane.xlu0 %249
    %v251 = vsel %vm241, %v240, 0.0
    %252 = vadd.xlane.f32.xlu0 %v251
    %v253 = vpop.xlane.xlu0 %252
    %v254 = vmul.f32 %v244, 0.0625
    %v255 = vmul.f32 %v247, 0.0625
    %v256 = vmul.f32 %v250, 0.0625
    %v257 = vmul.f32 %v253, 0.0625
    %v258 = vsub.f32 %v231, %v254
    %v259 = vsub.f32 %v239, %v255
    %v260 = vsub.f32 %v238, %v256
    %v261 = vsub.f32 %v240, %v257
    %v262 = vmul.f32 %v258, %v258
    %v263 = vmul.f32 %v259, %v259
    %v264 = vmul.f32 %v260, %v260
    %v265 = vmul.f32 %v261, %v261
    %v266 = vsel %vm241, %v262, 0.0
    %267 = vadd.xlane.f32.xlu0 %v266
    %v268 = vpop.xlane.xlu0 %267
    %v269 = vsel %vm241, %v263, 0.0
    %270 = vadd.xlane.f32.xlu0 %v269
    %v271 = vpop.xlane.xlu0 %270
    %v272 = vsel %vm241, %v264, 0.0
    %273 = vadd.xlane.f32.xlu0 %v272
    %v274 = vpop.xlane.xlu0 %273
    %v275 = vsel %vm241, %v265, 0.0
    %276 = vadd.xlane.f32.xlu0 %v275
    %v277 = vpop.xlane.xlu0 %276
    %v278 = vmul.f32 %v268, 0.0625
    %v279 = vmul.f32 %v271, 0.0625
    %v280 = vmul.f32 %v274, 0.0625
    %v281 = vmul.f32 %v277, 0.0625
    %v282 = vadd.f32 %v278, 1e-05
    %v283 = vadd.f32 %v279, 1e-05
    %v284 = vadd.f32 %v280, 1e-05
    %v285 = vadd.f32 %v281, 1e-05
    %v286 = vrsqrt.pop %v282
    %v287 = vrsqrt.pop %v283
    %v288 = vrsqrt.pop %v284
    %v289 = vrsqrt.pop %v285
    %v290 = vmul.f32 %v258, %v286
    %v291 = vmul.f32 %v259, %v287
    %v292 = vmul.f32 %v260, %v288
    %v293 = vmul.f32 %v261, %v289
    %v294 = vcombine.low %v290, %v292
    %v296 = vunpack.c.l.s4 1983009808
    %v297 = vunpack.c.0.s8 %v296
    %v298 = vlaneseq
    %v299 = vshrl.u32 %v298, 7
    %v300 = vsub.s32 %v297, %v299
    %v301 = vrot.slane %v294, %v300
    %v302 = vcombine.low %v291, %v293
    %v304 = vunpack.c.l.s4 1983009808
    %v305 = vunpack.c.0.s8 %v304
    %v306 = vlaneseq
    %v307 = vshrl.u32 %v306, 7
    %v308 = vsub.s32 %v305, %v307
    %v309 = vrot.slane %v302, %v308
    %v310 = vcombine.low %v301, %v309
    %v312 = vunpack.c.l.s4 1934713408
    %v313 = vunpack.c.0.s8 %v312
    %v314 = vlaneseq
    %v315 = vshrl.u32 %v314, 7
    %v316 = vsub.s32 %v313, %v315
    %v317 = vrot.slane %v310, %v316
    %v318 = vcombine.high %v317, 0.0
    %320 = vrot.lane.b32.xlu0 %v318, 16
    %v321 = vpop.permute.xlu0 %320
    %vm323 = vcmask 130048
    %v324 = vsel %vm323, %v317, %v321
    %v325 = vmax.f32 %v324, 0.0
    %327 = vrot.lane.b32.xlu0 %v325, 97
    %v328 = vpop.permute.xlu0 %327
    %330 = vrot.lane.b32.xlu0 %v325, 1
    %v331 = vpop.permute.xlu0 %330
    %v333 = vsel %vm107, %v328, %v331
    %v334 = vsel %vm98, 0.0, %v333
    %335 = vrot.lane.b32.xlu0 %v325, 127
    %v336 = vpop.permute.xlu0 %335
    %338 = vrot.lane.b32.xlu0 %v325, 31
    %v339 = vpop.permute.xlu0 %338
    %v341 = vsel %vm116, %v336, %v339
    %v342 = vsel %vm99, 0.0, %v341
    %v343 = vrot.slane %v325, 4
    %v345 = vsel %vm121, %v334, %v343
    %347 = vset.pattern.permute.xlu0 0
    %348 = vperm.xlu0 %347, %v83
    %v349 = vpop.permute.xlu0 %348
    %v352 = vsel %vm128, %v81, 0
    %v355 = vsel %vm121, %v342, 0
    %357 = vmatprep.subr.mxu0 0.0
    %358 = vmatpush1.msra.mxu0 %v345
    %359 = vmatprep.subr.mxu0 0.0
    %360 = vmatpush1.msra.mxu0 %v355
    %361 = vmatprep.subr.mxu0 0.0
    %362 = vmatpush1.msra.mxu0 0.0
    %363 = vmatprep.subr.mxu0 0.0
    %364 = vmatpush1.msra.mxu0 0.0
    %365 = vmatprep.subr.mxu0 0.0
    %366 = vmatpush1.msra.mxu0 0.0
    %367 = vmatprep.subr.mxu0 0.0
    %368 = vmatpush1.msra.mxu0 0.0
    %369 = vmatprep.subr.mxu0 0.0
    %370 = vmatpush1.msra.mxu0 0.0
    %371 = vmatprep.subr.mxu0 0.0
    %372 = vmatpush1.msra.mxu0 0.0
    %373 = vmatprep.subr.mxu0 0.0
    %374 = vmatpush1.msra.mxu0 0.0
    %375 = vmatprep.subr.mxu0 0.0
    %376 = vmatpush1.msra.mxu0 0.0
    %377 = vmatprep.subr.mxu0 0.0
    %378 = vmatpush1.msra.mxu0 0.0
    %379 = vmatprep.subr.mxu0 0.0
    %380 = vmatpush1.msra.mxu0 0.0
    %381 = vmatprep.subr.mxu0 0.0
    %382 = vmatpush1.msra.mxu0 0.0
    %383 = vmatprep.subr.mxu0 0.0
    %384 = vmatpush1.msra.mxu0 0.0
    %385 = vmatprep.subr.mxu0 0.0
    %386 = vmatpush1.msra.mxu0 0.0
    %387 = vmatprep.subr.mxu0 0.0
    %388 = vmatpush1.msra.mxu0 0.0
    %389 = vmatprep.subr.mxu0 0.0
    %390 = vmatpush1.msra.mxu0 0.0
    %391 = vmatprep.subr.mxu0 0.0
    %392 = vmatpush1.msra.mxu0 0.0
    %393 = vmatprep.subr.mxu0 0.0
    %394 = vmatpush1.msra.mxu0 0.0
    %395 = vmatprep.subr.mxu0 0.0
    %396 = vmatpush1.msra.mxu0 0.0
    %397 = vmatprep.subr.mxu0 0.0
    %398 = vmatpush1.msra.mxu0 0.0
    %399 = vmatprep.subr.mxu0 0.0
    %400 = vmatpush1.msra.mxu0 0.0
    %401 = vmatprep.subr.mxu0 0.0
    %402 = vmatpush1.msra.mxu0 0.0
    %403 = vmatprep.subr.mxu0 0.0
    %404 = vmatpush1.msra.mxu0 0.0
    %405 = vmatprep.subr.mxu0 0.0
    %406 = vmatpush1.msra.mxu0 0.0
    %407 = vmatprep.subr.mxu0 0.0
    %408 = vmatpush1.msra.mxu0 0.0
    %409 = vmatprep.subr.mxu0 0.0
    %410 = vmatpush1.msra.mxu0 0.0
    %411 = vmatprep.subr.mxu0 0.0
    %412 = vmatpush1.msra.mxu0 0.0
    %413 = vmatprep.subr.mxu0 0.0
    %414 = vmatpush1.msra.mxu0 0.0
    %415 = vmatprep.subr.mxu0 0.0
    %416 = vmatpush1.msra.mxu0 0.0
    %417 = vmatprep.subr.mxu0 0.0
    %418 = vmatpush1.msra.mxu0 0.0
    %419 = vmatprep.subr.mxu0 0.0
    %420 = vmatpush1.msra.mxu0 0.0
    %421 = vmatprep.mubr.f32.mxu0 0.0
    %422 = vmatmul.mubr.f32.gmra.mrb[0].mxu0 %v352
    %v423 = vpop.f32.mrb[0].mxu0
    %v424 = vadd.f32 %v349, %v423
    %v425 = vpop.f32.mrb[0].mxu0
    %426 = vdwg.mxu0
    %428 = vrot.lane.b32.xlu0 %v424, 112
    %v429 = vpop.permute.xlu0 %428
    %v431 = vunpack.c.l.s4 1983009808
    %v432 = vunpack.c.0.s8 %v431
    %v433 = vlaneseq
    %v434 = vshrl.u32 %v433, 7
    %v435 = vsub.s32 %v432, %v434
    %v436 = vrot.slane %v424, %v435
    %v439 = vunpack.c.l.s4 1983009808
    %v440 = vunpack.c.0.s8 %v439
    %v441 = vlaneseq
    %v442 = vshrl.u32 %v441, 7
    %v443 = vsub.s32 %v440, %v442
    %v444 = vrot.slane %v429, %v443
    %v445 = vcombine.low %v436, %v444
    %v446 = vcombine.high %v436, %v444
    %v448 = vunpack.c.l.s4 1934713408
    %v449 = vunpack.c.0.s8 %v448
    %v450 = vlaneseq
    %v451 = vshrl.u32 %v450, 7
    %v452 = vsub.s32 %v449, %v451
    %v453 = vrot.slane %v445, %v452
    %v455 = vunpack.c.l.s4 1934713408
    %v456 = vunpack.c.0.s8 %v455
    %v457 = vlaneseq
    %v458 = vshrl.u32 %v457, 7
    %v459 = vsub.s32 %v456, %v458
    %v460 = vrot.slane %v446, %v459
    %v461 = vcombine.high %v453, 0.0
    %v462 = vcombine.high %v460, 0.0
    %v463 = vsel %vm241, %v453, 0.0
    %464 = vadd.xlane.f32.xlu0 %v463
    %v465 = vpop.xlane.xlu0 %464
    %v466 = vsel %vm241, %v461, 0.0
    %467 = vadd.xlane.f32.xlu0 %v466
    %v468 = vpop.xlane.xlu0 %467
    %v469 = vsel %vm241, %v460, 0.0
    %470 = vadd.xlane.f32.xlu0 %v469
    %v471 = vpop.xlane.xlu0 %470
    %v472 = vsel %vm241, %v462, 0.0
    %473 = vadd.xlane.f32.xlu0 %v472
    %v474 = vpop.xlane.xlu0 %473
    %v475 = vmul.f32 %v465, 0.0625
    %v476 = vmul.f32 %v468, 0.0625
    %v477 = vmul.f32 %v471, 0.0625
    %v478 = vmul.f32 %v474, 0.0625
    %v479 = vsub.f32 %v453, %v475
    %v480 = vsub.f32 %v461, %v476
    %v481 = vsub.f32 %v460, %v477
    %v482 = vsub.f32 %v462, %v478
    %v483 = vmul.f32 %v479, %v479
    %v484 = vmul.f32 %v480, %v480
    %v485 = vmul.f32 %v481, %v481
    %v486 = vmul.f32 %v482, %v482
    %v487 = vsel %vm241, %v483, 0.0
    %488 = vadd.xlane.f32.xlu0 %v487
    %v489 = vpop.xlane.xlu0 %488
    %v490 = vsel %vm241, %v484, 0.0
    %491 = vadd.xlane.f32.xlu0 %v490
    %v492 = vpop.xlane.xlu0 %491
    %v493 = vsel %vm241, %v485, 0.0
    %494 = vadd.xlane.f32.xlu0 %v493
    %v495 = vpop.xlane.xlu0 %494
    %v496 = vsel %vm241, %v486, 0.0
    %497 = vadd.xlane.f32.xlu0 %v496
    %v498 = vpop.xlane.xlu0 %497
    %v499 = vmul.f32 %v489, 0.0625
    %v500 = vmul.f32 %v492, 0.0625
    %v501 = vmul.f32 %v495, 0.0625
    %v502 = vmul.f32 %v498, 0.0625
    %v503 = vadd.f32 %v499, 1e-05
    %v504 = vadd.f32 %v500, 1e-05
    %v505 = vadd.f32 %v501, 1e-05
    %v506 = vadd.f32 %v502, 1e-05
    %v507 = vrsqrt.pop %v503
    %v508 = vrsqrt.pop %v504
    %v509 = vrsqrt.pop %v505
    %v510 = vrsqrt.pop %v506
    %v511 = vmul.f32 %v479, %v507
    %v512 = vmul.f32 %v480, %v508
    %v513 = vmul.f32 %v481, %v509
    %v514 = vmul.f32 %v482, %v510
    %v515 = vcombine.low %v511, %v513
    %v517 = vunpack.c.l.s4 1983009808
    %v518 = vunpack.c.0.s8 %v517
    %v519 = vlaneseq
    %v520 = vshrl.u32 %v519, 7
    %v521 = vsub.s32 %v518, %v520
    %v522 = vrot.slane %v515, %v521
    %v523 = vcombine.low %v512, %v514
    %v525 = vunpack.c.l.s4 1983009808
    %v526 = vunpack.c.0.s8 %v525
    %v527 = vlaneseq
    %v528 = vshrl.u32 %v527, 7
    %v529 = vsub.s32 %v526, %v528
    %v530 = vrot.slane %v523, %v529
    %v531 = vcombine.low %v522, %v530
    %v533 = vunpack.c.l.s4 1934713408
    %v534 = vunpack.c.0.s8 %v533
    %v535 = vlaneseq
    %v536 = vshrl.u32 %v535, 7
    %v537 = vsub.s32 %v534, %v536
    %v538 = vrot.slane %v531, %v537
    %v539 = vcombine.high %v538, 0.0
    %541 = vrot.lane.b32.xlu0 %v539, 16
    %v542 = vpop.permute.xlu0 %541
    %v544 = vsel %vm323, %v538, %v542
    %v545 = vadd.f32 %v79, %v544
    %vm546 = vcmask 257024
    %547 = vst.msk [vmem:[#allocation11] sm:$0xf] %vm546, %v545
    // Predicated region
    $region42: #{tpu_custom_call.1} parent=1 // pred_check
      _
    $region43: #{tpu_custom_call.1} parent=1 // pred_check_branch
      %549 = sbr.rel (0) target = $region45
    $region44: #{tpu_custom_call.1} parent=1 // pred_region
      %s551 = ssub.s32 64, 64
      %552 = vsyncadd [#allocation4], %s551
      %s554 = sshll.u32 [#allocation11], 4
      %s555 = int_to_ptr.vmem [resolvable:$true] %s554
      %557 = dma.vmem_to_hbm [thread:$0]  %s555, 64, %s5, [#allocation4]
    $region45: #{tpu_custom_call.1} parent=1 // pred_fallthru
      _
    // Predicated region
    $region46: #{tpu_custom_call.1} parent=1 // pred_check
      _
    $region47: #{tpu_custom_call.1} parent=1 // pred_check_branch
      %559 = sbr.rel (0) target = $region49
    $region48: #{tpu_custom_call.1} parent=1 // pred_region
      %560 = dma.done [#allocation4], 64
    $region49: #{tpu_custom_call.1} parent=1 // pred_fallthru
      _
    %561 = vsyncpa [#allocation3], 1
    %562 = vsyncpa [#allocation6], 1
    %563 = vsyncpa [#allocation9], 1
    %564 = vsyncpa [#allocation4], 1

</llo_original>
